<compile_context>
chip_gen: v7x
topology: tpu7x:2x2x1
jax: 0.10.0
libtpu: 0.0.40
codegen_flags: <defaults>
</compile_context>

<pallas_src>
import math
import jax
import jax.numpy as jnp
from jax.experimental import pallas as pl
from jax.experimental.pallas import tpu as pltpu


def _round_up(x, m):
    return (x + m - 1) // m * m


def _pick_tile(dim, align, cap=512):
    """Largest tile <= ~cap (aligned) that keeps padding waste to < align."""
    if dim <= cap:
        return _round_up(dim, align)
    nblocks = -(-dim // cap)                 # ceil(dim / cap)
    return _round_up(-(-dim // nblocks), align)


def encoder_kernel(x_ref, w_ref, b_ref, o_ref):
    # x_ref: (tm, K) bf16, w_ref: (K, tn) bf16, b_ref: (1, tn) f32, o_ref: (tm, tn) f32
    acc = jnp.dot(x_ref[...], w_ref[...], preferred_element_type=jnp.float32)
    acc = acc + b_ref[...]                   # broadcast (1, tn) over rows
    o_ref[...] = jnp.maximum(acc, 0.0).astype(o_ref.dtype)


def encoder_forward(x, w_kn, bias):
    """Forward of Encoder (Linear + ReLU).

    x:    (..., K) float32
    w_kn: (K, N)   float32 -- nn.Linear weight already transposed (stored once)
    bias: (N,)     float32
    returns (..., N) float32
    """
    Kw, N = w_kn.shape
    assert x.shape[-1] == Kw and bias.shape == (N,)

    lead_shape = x.shape[:-1]
    x2 = x.reshape(-1, Kw)
    M, K = x2.shape

    # ---- tile selection -----------------------------------------------------
    tm = _pick_tile(M, 8, cap=512)      # sublane-aligned row tile
    tn = _pick_tile(N, 128, cap=512)    # lane-dense output tile (unmasked vst)

    # VMEM safety: shrink tiles if the double-buffered footprint is too big
    # (K is not tiled, so very large K could otherwise blow the budget).
    def footprint(tm_, tn_):
        return 2 * (tm_ * K * 2 + K * tn_ * 2 + tm_ * tn_ * 4 + tn_ * 4)

    budget = 64 * 1024 * 1024
    while footprint(tm, tn) > budget and (tm > 8 or tn > 128):
        if tm >= tn and tm > 8:
            tm = max(8, _round_up(tm // 2, 8))
        elif tn > 128:
            tn = max(128, _round_up(tn // 2, 128))
        else:
            break

    Mp = _round_up(M, tm)
    Np = _round_up(N, tn)

    # ---- padding (handles ragged M / N) -------------------------------------
    xp = x2 if Mp == M else jnp.pad(x2, ((0, Mp - M), (0, 0)))
    wp = w_kn if Np == N else jnp.pad(w_kn, ((0, 0), (0, Np - N)))
    bp = bias if Np == N else jnp.pad(bias, ((0, Np - N),))

    # ---- dtype: bf16 operands for the MXU, f32 accumulate / epilogue --------
    x_bf = xp.astype(jnp.bfloat16)
    w_bf = wp.astype(jnp.bfloat16)
    b2 = bp.reshape(1, Np).astype(jnp.float32)

    grid = (Mp // tm, Np // tn)

    cost = pl.CostEstimate(
        flops=2 * Mp * K * Np,
        transcendentals=0,
        bytes_accessed=2 * (Mp * K + K * Np) + 4 * (Mp * Np + Np),
    )

    out = pl.pallas_call(
        encoder_kernel,
        out_shape=jax.ShapeDtypeStruct((Mp, Np), jnp.float32),
        grid_spec=pltpu.PrefetchScalarGridSpec(
            num_scalar_prefetch=0,
            grid=grid,
            in_specs=[
                pl.BlockSpec((tm, K), lambda i, j: (i, 0)),   # x row tile
                pl.BlockSpec((K, tn), lambda i, j: (0, j)),   # weight column tile
                pl.BlockSpec((1, tn), lambda i, j: (0, j)),   # bias tile
            ],
            out_specs=pl.BlockSpec((tm, tn), lambda i, j: (i, j)),
        ),
        compiler_params=pltpu.CompilerParams(
            dimension_semantics=("parallel", "parallel"),
            vmem_limit_bytes=96 * 1024 * 1024,
        ),
        cost_estimate=cost,
    )(x_bf, w_bf, b2)

    if Mp != M or Np != N:
        out = out[:M, :N]
    return out.reshape(*lead_shape, N)


def init_linear_params(key, input_dim, output_dim):
    """Deterministic init mirroring nn.Linear's default.

    Returns the weight ALREADY transposed to (K, N) so the forward never pays a
    per-call transpose, plus the (N,) bias.
    """
    kw, kb = jax.random.split(key)
    bound = 1.0 / math.sqrt(input_dim)
    weight_nk = jax.random.uniform(
        kw, (output_dim, input_dim), jnp.float32, -bound, bound)  # PyTorch layout
    bias = jax.random.uniform(
        kb, (output_dim,), jnp.float32, -bound, bound)
    return weight_nk.T, bias   # store (K, N) once, outside the hot path


if __name__ == "__main__":
    key = jax.random.PRNGKey(0)
    k_x, k_p = jax.random.split(key)

    batch, input_dim, output_dim = 16, 32, 64

    x = jax.random.normal(k_x, (batch, input_dim), jnp.float32)
    w_kn, bias = init_linear_params(k_p, input_dim, output_dim)

    out = jax.block_until_ready(encoder_forward(x, w_kn, bias))

    # Reference: plain-JAX Linear + ReLU in f32 (kernel uses bf16 operands,
    # f32 accumulate, so allow bf16-level tolerance).
    ref = jnp.maximum(x @ w_kn + bias, 0.0)
    assert out.shape == (batch, output_dim)
    assert jnp.allclose(out, ref, atol=5e-2, rtol=5e-2), float(
        jnp.max(jnp.abs(out - ref)))

    print("KERNEL_OK")
</pallas_src>

<mosaic_0001>
module attributes {stable_mosaic.version = 11 : i64} {
  func.func @encoder_kernel(%arg0: i32, %arg1: i32, %arg2: memref<16x32xbf16, #tpu.memory_space<vmem>>, %arg3: memref<32x128xbf16, #tpu.memory_space<vmem>>, %arg4: memref<1x128xf32, #tpu.memory_space<vmem>>, %arg5: memref<16x128xf32, #tpu.memory_space<vmem>>) attributes {dimension_semantics = [#tpu.dimension_semantics<parallel>, #tpu.dimension_semantics<parallel>], iteration_bounds = array<i64: 1, 1>, scalar_prefetch = 0 : i64, scratch_operands = 0 : i64, tpu.core_type = #tpu.core_type<tc>, window_params = [{transform_indices = @transform_0, window_bounds = array<i64: 16, 32>}, {transform_indices = @transform_1, window_bounds = array<i64: 32, 128>}, {transform_indices = @transform_2, window_bounds = array<i64: 1, 128>}, {transform_indices = @transform_3, window_bounds = array<i64: 16, 128>}]} {
    %c0 = arith.constant 0 : index
    %c0_0 = arith.constant 0 : index
    %0 = vector.load %arg2[%c0, %c0_0] : memref<16x32xbf16, #tpu.memory_space<vmem>>, vector<16x32xbf16>
    %c0_1 = arith.constant 0 : index
    %c0_2 = arith.constant 0 : index
    %1 = vector.load %arg3[%c0_1, %c0_2] : memref<32x128xbf16, #tpu.memory_space<vmem>>, vector<32x128xbf16>
    %cst = arith.constant dense<0.000000e+00> : vector<16x128xf32>
    %2 = tpu.matmul %0, %1, %cst {dimension_numbers = #tpu.dot_dimension_numbers<[1], [0], [0], [1], [0, 0, 1, 1], [], []>} : vector<16x32xbf16>, vector<32x128xbf16>, vector<16x128xf32> -> vector<16x128xf32>
    %c0_3 = arith.constant 0 : index
    %c0_4 = arith.constant 0 : index
    %3 = vector.load %arg4[%c0_3, %c0_4] : memref<1x128xf32, #tpu.memory_space<vmem>>, vector<1x128xf32>
    %4 = vector.broadcast %3 : vector<1x128xf32> to vector<16x128xf32>
    %5 = arith.addf %2, %4 : vector<16x128xf32>
    %cst_5 = arith.constant 0.000000e+00 : f32
    %6 = vector.broadcast %cst_5 : f32 to vector<16x128xf32>
    %7 = arith.maximumf %5, %6 : vector<16x128xf32>
    %c0_6 = arith.constant 0 : index
    %c0_7 = arith.constant 0 : index
    %8 = vector.load %arg5[%c0_6, %c0_7] : memref<16x128xf32, #tpu.memory_space<vmem>>, vector<16x128xf32>
    tpu.vector_store %arg5[%c0_6, %c0_7], %7 {strides = array<i32>} : memref<16x128xf32, #tpu.memory_space<vmem>>, vector<16x128xf32>,
    return
  }
  func.func @transform_0(%arg0: i32, %arg1: i32) -> (i32, i32) {
    %c0_i32 = arith.constant 0 : i32
    %c0_i32_0 = arith.constant 0 : i32
    return %arg0, %c0_i32 : i32, i32
  }
  func.func @transform_1(%arg0: i32, %arg1: i32) -> (i32, i32) {
    %c0_i32 = arith.constant 0 : i32
    %c0_i32_0 = arith.constant 0 : i32
    return %c0_i32, %arg1 : i32, i32
  }
  func.func @transform_2(%arg0: i32, %arg1: i32) -> (i32, i32) {
    %c0_i32 = arith.constant 0 : i32
    %c0_i32_0 = arith.constant 0 : i32
    return %c0_i32, %arg1 : i32, i32
  }
  func.func @transform_3(%arg0: i32, %arg1: i32) -> (i32, i32) {
    %c0_i32 = arith.constant 0 : i32
    return %arg0, %arg1 : i32, i32
  }
}

</mosaic_0001>

<llo_original>
// kernel: tpu_custom_call.1
$region0: #{tpu_custom_call.1}
  #allocation0 [shape = 'u32[]', space=smem, size = 0x4, offset = 0x4, fixed_abs, tag = 'smem constant byte address 0x4 - core index']
  #allocation1 [shape = 'u32[144,128]{1,0:T(1,128)}', space=vmem, size = 0x12000, scoped, tag = 'internal scratch']
  %s0 = inlined_call_operand.hbm [shape: bf16[16,32], index: 0, kind: input, shape index: {}]
  %s1 = inlined_call_operand.hbm [shape: bf16[32,128], index: 1, kind: input, shape index: {}]
  %s2 = inlined_call_operand.hbm [shape: f32[1,128], index: 2, kind: input, shape index: {}]
  %s3 = inlined_call_operand.hbm [shape: f32[16,128], index: 3, kind: output, shape index: {}]
  %s4 = sld [smem:[#allocation0]]
  $region34: #{tpu_custom_call.1} parent=0
    _
  %s6 = ssub.s32 1, %s4
  %s7 = scalar_select 0, %s6, %s4
  $region1: #{tpu_custom_call.1} parent=0
    #allocation2 [shape = 'u8[4096]{0}', space=vmem, size = 0x1000, scoped, tag = 'input window, operand 0, single buffered']
    #allocation3 [shape = 's32[1]{0}', space=sflag, size = 0x4, scoped, tag = 'scoped memory for tpu_custom_call.1']
    #allocation4 [shape = 's32[1]{0}', space=sflag, size = 0x4, scoped, tag = 'scoped memory for tpu_custom_call.1']
    #allocation5 [shape = 'u8[8192]{0}', space=vmem, size = 0x2000, scoped, tag = 'input window, operand 1, single buffered']
    #allocation6 [shape = 's32[1]{0}', space=sflag, size = 0x4, scoped, tag = 'scoped memory for tpu_custom_call.1']
    #allocation7 [shape = 'u8[512]{0}', space=vmem, size = 0x400, scoped, tag = 'input window, operand 2, single buffered']
    #allocation8 [shape = 'u8[8192]{0}', space=vmem, size = 0x2000, scoped, tag = 'output window, operand 0, single buffered']
    %8 = vsyncpa [#allocation3], 0
    %9 = vsyncpa [#allocation6], 0
    %10 = vsyncpa [#allocation4], 0
    // Predicated region
    $region2: #{tpu_custom_call.1} parent=1 // pred_check
      _
    $region3: #{tpu_custom_call.1} parent=1 // pred_check_branch
      %12 = sbr.rel (0) target = $region5
    $region4: #{tpu_custom_call.1} parent=1 // pred_region
      %s14 = ssub.s32 128, 128
      %15 = vsyncadd [#allocation3], %s14
      %s16 = sshll.u32 [#allocation2], 4
      %s17 = int_to_ptr.vmem [resolvable:$true] %s16
      %22 = dma.hbm_to_vmem [thread:$0]  %s0, 128, %s17, [#allocation3], 64, 64, 4
    $region5: #{tpu_custom_call.1} parent=1 // pred_fallthru
      _
    // Predicated region
    $region6: #{tpu_custom_call.1} parent=1 // pred_check
      _
    $region7: #{tpu_custom_call.1} parent=1 // pred_check_branch
      %24 = sbr.rel (0) target = $region9
    $region8: #{tpu_custom_call.1} parent=1 // pred_region
      %s26 = ssub.s32 256, 256
      %27 = vsyncadd [#allocation6], %s26
      %s28 = sshll.u32 [#allocation5], 4
      %s29 = int_to_ptr.vmem [resolvable:$true] %s28
      %34 = dma.hbm_to_vmem [thread:$0]  %s1, 256, %s29, [#allocation6], 64, 64, 4
    $region9: #{tpu_custom_call.1} parent=1 // pred_fallthru
      _
    // Predicated region
    $region10: #{tpu_custom_call.1} parent=1 // pred_check
      _
    $region11: #{tpu_custom_call.1} parent=1 // pred_check_branch
      %36 = sbr.rel (0) target = $region13
    $region12: #{tpu_custom_call.1} parent=1 // pred_region
      %s38 = ssub.s32 16, 16
      %39 = vsyncadd [#allocation6], %s38
      %s41 = sshll.u32 [#allocation7], 4
      %s42 = int_to_ptr.vmem [resolvable:$true] %s41
      %44 = dma.hbm_to_vmem [thread:$0]  %s2, 16, %s42, [#allocation6]
    $region13: #{tpu_custom_call.1} parent=1 // pred_fallthru
      _
    // Predicated region
    $region14: #{tpu_custom_call.1} parent=1 // pred_check
      _
    $region15: #{tpu_custom_call.1} parent=1 // pred_check_branch
      %46 = sbr.rel (0) target = $region17
    $region16: #{tpu_custom_call.1} parent=1 // pred_region
      %47 = dma.done [#allocation3], 128
    $region17: #{tpu_custom_call.1} parent=1 // pred_fallthru
      _
    // Predicated region
    $region18: #{tpu_custom_call.1} parent=1 // pred_check
      _
    $region19: #{tpu_custom_call.1} parent=1 // pred_check_branch
      %49 = sbr.rel (0) target = $region21
    $region20: #{tpu_custom_call.1} parent=1 // pred_region
      %50 = dma.done [#allocation6], 256
    $region21: #{tpu_custom_call.1} parent=1 // pred_fallthru
      _
    // Predicated region
    $region22: #{tpu_custom_call.1} parent=1 // pred_check
      _
    $region23: #{tpu_custom_call.1} parent=1 // pred_check_branch
      %52 = sbr.rel (0) target = $region25
    $region24: #{tpu_custom_call.1} parent=1 // pred_region
      %53 = dma.done [#allocation6], 16
    $region25: #{tpu_custom_call.1} parent=1 // pred_fallthru
      _
    %v55 = vld [vmem:[#allocation2] sm:$0xf]
    %v56 = vld [vmem:[#allocation2 + $0x4] sm:$0xf]
    %v57 = vld [vmem:[#allocation5] sm:$0xf]
    %v58 = vld [vmem:[#allocation5 + $0x4] sm:$0xf]
    %v59 = vld [vmem:[#allocation5 + $0x8] sm:$0xf]
    %v60 = vld [vmem:[#allocation5 + $0xc] sm:$0xf]
    %v61 = vld [vmem:[#allocation7] sm:$0x1]
    %v63 = vlaneseq
    %v64 = vshrl.u32 %v63, 7
    %v65 = vsub.s32 0, %v64
    %v66 = vrot.slane %v61, %v65
    %v70 = vunpack.c.l.b16 %v55
    %v71 = vunpack.c.l.b16 %v56
    %v72 = vpack.c.b16 %v71, %v70
    %v77 = vunpack.c.l.b16 %v57
    %v78 = vunpack.c.l.b16 %v58
    %v79 = vunpack.c.l.b16 %v59
    %v80 = vunpack.c.l.b16 %v60
    %v81 = vpack.c.b16 %v78, %v77
    %v82 = vpack.c.b16 %v80, %v79
    %vm85 = vcmask 261120
    %v87 = vsel %vm85, %v72, 0
    %89 = vmatprep.subr.bf16.mxu0 0
    %90 = vmatpush1.bf16.msra.mxu0 %v81
    %91 = vmatprep.subr.bf16.mxu0 0
    %92 = vmatpush1.bf16.msra.mxu0 %v82
    %93 = vmatprep.subr.bf16.mxu0 0
    %94 = vmatpush1.bf16.msra.mxu0 0
    %95 = vmatprep.subr.bf16.mxu0 0
    %96 = vmatpush1.bf16.msra.mxu0 0
    %97 = vmatprep.subr.bf16.mxu0 0
    %98 = vmatpush1.bf16.msra.mxu0 0
    %99 = vmatprep.subr.bf16.mxu0 0
    %100 = vmatpush1.bf16.msra.mxu0 0
    %101 = vmatprep.subr.bf16.mxu0 0
    %102 = vmatpush1.bf16.msra.mxu0 0
    %103 = vmatprep.subr.bf16.mxu0 0
    %104 = vmatpush1.bf16.msra.mxu0 0
    %105 = vmatprep.subr.bf16.mxu0 0
    %106 = vmatpush1.bf16.msra.mxu0 0
    %107 = vmatprep.subr.bf16.mxu0 0
    %108 = vmatpush1.bf16.msra.mxu0 0
    %109 = vmatprep.subr.bf16.mxu0 0
    %110 = vmatpush1.bf16.msra.mxu0 0
    %111 = vmatprep.subr.bf16.mxu0 0
    %112 = vmatpush1.bf16.msra.mxu0 0
    %113 = vmatprep.subr.bf16.mxu0 0
    %114 = vmatpush1.bf16.msra.mxu0 0
    %115 = vmatprep.subr.bf16.mxu0 0
    %116 = vmatpush1.bf16.msra.mxu0 0
    %117 = vmatprep.subr.bf16.mxu0 0
    %118 = vmatpush1.bf16.msra.mxu0 0
    %119 = vmatprep.subr.bf16.mxu0 0
    %120 = vmatpush1.bf16.msra.mxu0 0
    %121 = vmatprep.mubr.bf16.mxu0 0
    %122 = vmatmul.mubr.bf16.gmra.mrb[0].mxu0 %v87
    %v123 = vpop.f32.mrb[0].mxu0
    %v124 = vadd.f32 %v66, %v123
    %v125 = vpop.f32.mrb[0].mxu0
    %v126 = vpop.f32.mrb[0].mxu0
    %v127 = vadd.f32 %v66, %v126
    %v128 = vpop.f32.mrb[0].mxu0
    %129 = vdwg.mxu0
    %v130 = vmax.f32 %v124, 0.0
    %v131 = vmax.f32 %v127, 0.0
    %132 = vst [vmem:[#allocation8] sm:$0xff] %v130
    %133 = vst [vmem:[#allocation8 + $0x8] sm:$0xff] %v131
    // Predicated region
    $region26: #{tpu_custom_call.1} parent=1 // pred_check
      _
    $region27: #{tpu_custom_call.1} parent=1 // pred_check_branch
      %135 = sbr.rel (0) target = $region29
    $region28: #{tpu_custom_call.1} parent=1 // pred_region
      %s137 = ssub.s32 256, 256
      %138 = vsyncadd [#allocation4], %s137
      %s139 = sshll.u32 [#allocation8], 4
      %s140 = int_to_ptr.vmem [resolvable:$true] %s139
      %145 = dma.vmem_to_hbm [thread:$0]  %s140, 256, %s3, [#allocation4], 128, 128, 8
    $region29: #{tpu_custom_call.1} parent=1 // pred_fallthru
      _
    // Predicated region
    $region30: #{tpu_custom_call.1} parent=1 // pred_check
      _
    $region31: #{tpu_custom_call.1} parent=1 // pred_check_branch
      %147 = sbr.rel (0) target = $region33
    $region32: #{tpu_custom_call.1} parent=1 // pred_region
      %148 = dma.done [#allocation4], 256
    $region33: #{tpu_custom_call.1} parent=1 // pred_fallthru
      _
    %149 = vsyncpa [#allocation3], 1
    %150 = vsyncpa [#allocation6], 1
    %151 = vsyncpa [#allocation4], 1

</llo_original>
